<compile_context>
chip_gen: v5e
topology: v5e:2x2
jax: 0.10.0
libtpu: 0.0.40
codegen_flags: <defaults>
</compile_context>

<pallas_src>
from functools import partial

import jax
import jax.numpy as jnp
import numpy as np
from jax.experimental import pallas as pl
from jax.experimental.pallas import tpu as pltpu

_LANES = 128
_VMEM_LIMIT_BYTES = 48 * 1024 * 1024     # explicit scoped-VMEM request (v7x physical is 64 MiB)
_BLOCK_BUDGET_BYTES = 32 * 1024 * 1024   # what the tile-sizing math may consume (blocks + temps)


# ----------------------------------------------------------------------------
# Kernel
# ----------------------------------------------------------------------------
def _masked_sigmoid_kernel(mask_ref, x_ref, o_ref, *, neg_inv_factor,
                           approx_recip, compute_dtype):
    """x_ref/o_ref: (TILE_R, W) tile.  mask_ref: (1, W) int32 (0 = pass-through)."""
    x = x_ref[...]
    m = mask_ref[...] != 0                                    # (1, W) bool, broadcasts
    one = compute_dtype(1.0)
    # negation folded into the static constant: sigmoid(x/f) = 1/(1+exp(x * (-1/f)))
    z = x.astype(compute_dtype) * compute_dtype(neg_inv_factor)
    den = jnp.exp(z) + one                                    # exp -> EUP slot
    if approx_recip:
        sig = pl.reciprocal(den, approx=True)                 # EUP vrcp, frees VALU slots
    else:
        sig = one / den                                       # exact, matches torch.sigmoid
    o_ref[...] = jnp.where(m, sig.astype(x.dtype), x)         # single dense store


# ----------------------------------------------------------------------------
# Tile sizing
# ----------------------------------------------------------------------------
def _sublane_multiple(itemsize):
    # sub-32-bit dtypes pack along sublanes
    return {4: 8, 2: 16, 1: 32}.get(int(itemsize), 8)


def _auto_tile_rows(n_rows, row_width, itemsize, compute_itemsize):
    padded_w = max(row_width, _LANES)  # lanes pad to 128
    # in + out blocks, each double-buffered, plus ~3 full-tile compute-dtype temporaries
    per_row = 4 * padded_w * itemsize + 3 * padded_w * compute_itemsize
    sub = _sublane_multiple(itemsize)
    t = max(sub, (_BLOCK_BUDGET_BYTES // per_row) // sub * sub)
    if t >= n_rows:
        # A single-tile grid can't shard across v7x's two TensorCores: split into
        # two parallel grid steps whenever there are enough rows.
        if n_rows >= 2 * sub:
            half = -(-n_rows // 2)             # ceil(n/2)
            t = -(-half // sub) * sub          # round up to the sublane multiple
        else:
            t = n_rows                         # full-extent block (always legal)
    return t


# ----------------------------------------------------------------------------
# Wrappers
# ----------------------------------------------------------------------------
def logit_transform_back_ref(x, mask, factor=1.0):
    """Pure-JAX reference mirroring the PyTorch forward."""
    m = jnp.asarray([bool(v) for v in mask], dtype=bool)[None, :]
    return jnp.where(m, jax.nn.sigmoid(x / jnp.asarray(factor, x.dtype)), x)


def logit_transform_back(x, mask, factor=1.0, *, min_pallas_bytes=256 * 1024,
                         approx_recip=False, compute_dtype=jnp.float32):
    """Row-major entry point: x is (N, D), mask is a length-D bool list."""
    n, d = x.shape
    assert len(mask) == d, (len(mask), d)

    if x.size * x.dtype.itemsize < min_pallas_bytes:
        # Tiny inputs: kernel launch + pipeline overhead dwarfs the work.
        return logit_transform_back_ref(x, mask, factor)

    neg_inv_factor = -1.0 / float(factor)
    mask_i32 = jnp.asarray([1 if b else 0 for b in mask], dtype=jnp.int32)

    # Lane-dense layout for narrow feature dims: (N, D) -> (N*D/128, 128) with the
    # mask tiled so mask128[c] == mask[c % D].  Pure layout plumbing (XLA reshape
    # of a contiguous row-major array), no extra HBM pass.
    lane_dense = (d < _LANES) and (_LANES % d == 0) and ((n * d) % _LANES == 0)
    if lane_dense:
        rows, width = (n * d) // _LANES, _LANES
        x2 = x.reshape(rows, width)
        mask_arr = jnp.tile(mask_i32, _LANES // d).reshape(1, width)
    else:
        rows, width = n, d
        x2 = x
        mask_arr = mask_i32.reshape(1, d)

    tr = _auto_tile_rows(rows, width, x.dtype.itemsize,
                         jnp.dtype(compute_dtype).itemsize)
    grid = (pl.cdiv(rows, tr),)

    kernel = partial(_masked_sigmoid_kernel, neg_inv_factor=neg_inv_factor,
                     approx_recip=approx_recip, compute_dtype=compute_dtype)

    out2 = pl.pallas_call(
        kernel,
        out_shape=jax.ShapeDtypeStruct((rows, width), x.dtype),
        grid=grid,
        in_specs=[
            pl.BlockSpec((1, width), lambda i: (0, 0)),    # mask (tiny, VMEM-resident)
            pl.BlockSpec((tr, width), lambda i: (i, 0)),   # x tile
        ],
        out_specs=pl.BlockSpec((tr, width), lambda i: (i, 0)),
        compiler_params=pltpu.CompilerParams(
            dimension_semantics=("parallel",),
            vmem_limit_bytes=_VMEM_LIMIT_BYTES,
        ),
    )(mask_arr, x2)

    return out2.reshape(n, d) if lane_dense else out2


# ----------------------------------------------------------------------------
# Demo / correctness check
# ----------------------------------------------------------------------------
if __name__ == "__main__":
    key = jax.random.PRNGKey(0)
    k1, k2 = jax.random.split(key)

    # Case 1: narrow feature dim -> exercises the lane-dense reshape path.
    n1, d1 = 256, 32
    factor = 2.0
    mask1 = [(i % 3 != 0) for i in range(d1)]        # mix of sigmoid / pass-through cols
    x1 = jax.random.normal(k1, (n1, d1), dtype=jnp.float32) * 3.0

    out1 = jax.block_until_ready(
        logit_transform_back(x1, mask1, factor, min_pallas_bytes=0))
    ref1 = logit_transform_back_ref(x1, mask1, factor)
    assert out1.shape == x1.shape, out1.shape
    np.testing.assert_allclose(np.asarray(out1), np.asarray(ref1), rtol=1e-5, atol=1e-6)

    # Same case with the EUP approx reciprocal (looser tolerance).
    out1a = jax.block_until_ready(
        logit_transform_back(x1, mask1, factor, min_pallas_bytes=0, approx_recip=True))
    np.testing.assert_allclose(np.asarray(out1a), np.asarray(ref1), rtol=5e-3, atol=1e-3)

    # Case 2: wide feature dim (>= 128) -> exercises the (tn, D) path.
    n2, d2 = 64, 256
    mask2 = [(i % 2 == 0) for i in range(d2)]
    x2 = jax.random.normal(k2, (n2, d2), dtype=jnp.float32) * 3.0

    out2 = jax.block_until_ready(
        logit_transform_back(x2, mask2, factor, min_pallas_bytes=0))
    ref2 = logit_transform_back_ref(x2, mask2, factor)
    assert out2.shape == x2.shape, out2.shape
    np.testing.assert_allclose(np.asarray(out2), np.asarray(ref2), rtol=1e-5, atol=1e-6)

    print("KERNEL_OK")
</pallas_src>

<mosaic_0001>
module attributes {stable_mosaic.version = 11 : i64} {
  func.func @_masked_sigmoid_kernel(%arg0: i32, %arg1: memref<1x128xi32, #tpu.memory_space<vmem>>, %arg2: memref<32x128xf32, #tpu.memory_space<vmem>>, %arg3: memref<32x128xf32, #tpu.memory_space<vmem>>) attributes {dimension_semantics = [#tpu.dimension_semantics<parallel>], iteration_bounds = array<i64: 2>, scalar_prefetch = 0 : i64, scratch_operands = 0 : i64, tpu.core_type = #tpu.core_type<tc>, window_params = [{pipeline_mode = #tpu.pipeline_mode<synchronous>, transform_indices = @transform_0, window_bounds = array<i64: 1, 128>}, {transform_indices = @transform_1, window_bounds = array<i64: 32, 128>}, {transform_indices = @transform_2, window_bounds = array<i64: 32, 128>}]} {
    %c0 = arith.constant 0 : index
    %c0_0 = arith.constant 0 : index
    %0 = vector.load %arg2[%c0, %c0_0] : memref<32x128xf32, #tpu.memory_space<vmem>>, vector<32x128xf32>
    %c0_1 = arith.constant 0 : index
    %c0_2 = arith.constant 0 : index
    %1 = vector.load %arg1[%c0_1, %c0_2] : memref<1x128xi32, #tpu.memory_space<vmem>>, vector<1x128xi32>
    %c0_i32 = arith.constant 0 : i32
    %2 = vector.broadcast %c0_i32 : i32 to vector<1x128xi32>
    %3 = arith.cmpi ne, %1, %2 : vector<1x128xi32>
    %cst = arith.constant -5.000000e-01 : f32
    %4 = vector.broadcast %cst : f32 to vector<32x128xf32>
    %5 = arith.mulf %0, %4 : vector<32x128xf32>
    %6 = math.exp %5 : vector<32x128xf32>
    %cst_3 = arith.constant 1.000000e+00 : f32
    %7 = vector.broadcast %cst_3 : f32 to vector<32x128xf32>
    %8 = arith.addf %6, %7 : vector<32x128xf32>
    %cst_4 = arith.constant 1.000000e+00 : f32
    %9 = vector.broadcast %cst_4 : f32 to vector<32x128xf32>
    %10 = arith.divf %9, %8 : vector<32x128xf32>
    %11 = vector.shape_cast %3 : vector<1x128xi1> to vector<1x128xi1>
    %12 = vector.broadcast %11 : vector<1x128xi1> to vector<32x128xi1>
    %13 = arith.select %12, %10, %0 : vector<32x128xi1>, vector<32x128xf32>
    %c0_5 = arith.constant 0 : index
    %c0_6 = arith.constant 0 : index
    %14 = vector.load %arg3[%c0_5, %c0_6] : memref<32x128xf32, #tpu.memory_space<vmem>>, vector<32x128xf32>
    tpu.vector_store %arg3[%c0_5, %c0_6], %13 {strides = array<i32>} : memref<32x128xf32, #tpu.memory_space<vmem>>, vector<32x128xf32>,
    return
  }
  func.func @transform_0(%arg0: i32) -> (i32, i32) {
    %c0_i32 = arith.constant 0 : i32
    %c0_i32_0 = arith.constant 0 : i32
    %c0_i32_1 = arith.constant 0 : i32
    return %c0_i32, %c0_i32_0 : i32, i32
  }
  func.func @transform_1(%arg0: i32) -> (i32, i32) {
    %c0_i32 = arith.constant 0 : i32
    %c0_i32_0 = arith.constant 0 : i32
    return %arg0, %c0_i32 : i32, i32
  }
  func.func @transform_2(%arg0: i32) -> (i32, i32) {
    %c0_i32 = arith.constant 0 : i32
    %c0_i32_0 = arith.constant 0 : i32
    return %arg0, %c0_i32 : i32, i32
  }
}

</mosaic_0001>

<llo_original>
// kernel: tpu_custom_call.1
$region0: #{tpu_custom_call.1}
  #allocation0 [shape = 'u32[]', space=smem, size = 0x4, offset = 0x4, fixed_abs, tag = 'smem constant byte address 0x4 - core index']
  #allocation1 [shape = 'u32[72,128]{1,0:T(1,128)}', space=vmem, size = 0x9000, scoped, tag = 'internal scratch']
  %s0 = inlined_call_operand.hbm [shape: s32[1,128], index: 0, kind: input, shape index: {}]
  %s1 = inlined_call_operand.hbm [shape: f32[64,128], index: 1, kind: input, shape index: {}]
  %s2 = inlined_call_operand.hbm [shape: f32[64,128], index: 2, kind: output, shape index: {}]
  %s3 = sld [smem:[#allocation0]]
  $region49: #{tpu_custom_call.1} parent=0
    _
  %s5 = ssub.s32 1, %s3
  %s6 = scalar_select 0, %s5, %s3
  $region1: #{tpu_custom_call.1} parent=0
    #allocation2 [shape = 'u8[512]{0}', space=vmem, size = 0x400, scoped, tag = 'input window, operand 0, single buffered']
    #allocation3 [shape = 's32[2]{0}', space=sflag, size = 0x8, scoped, tag = 'scoped memory for tpu_custom_call.1']
    #allocation4 [shape = 's32[2]{0}', space=sflag, size = 0x8, scoped, tag = 'scoped memory for tpu_custom_call.1']
    #allocation5 [shape = 'u8[32768]{0}', space=vmem, size = 0x8000, scoped, tag = 'input window, operand 1']
    #allocation6 [shape = 's32[2]{0}', space=sflag, size = 0x8, scoped, tag = 'scoped memory for tpu_custom_call.1']
    #allocation7 [shape = 'u8[32768]{0}', space=vmem, size = 0x8000, scoped, tag = 'output window, operand 0']
    %7 = vsyncpa [#allocation3], 0
    %8 = vsyncpa [#allocation6], 0
    %s9 = scalar_lea.sflag [#allocation6], 1
    %10 = vsyncpa %s9, 0
    %11 = vsyncpa [#allocation4], 0
    %s12 = scalar_lea.sflag [#allocation4], 1
    %13 = vsyncpa %s12, 0
    loop: start=0, step=1, limit=4
    $region2: #{tpu_custom_call.1} parent=1 // loop_pre_header
      _
    $region3: #{tpu_custom_call.1} parent=1 // loop_header
      %s15 = sphi 0, %s19
      %p16 = scmp.ge.s32.totalorder %s15, 4
      %s23 = sphi 0, %s23
      %s25 = sphi 0, %s23
      %s26 = sphi 0, %s25
      %s40 = sphi 0, %s26
      %s46 = sphi 0, %s48
      %s49 = sphi 0, %s46
      %s50 = sphi 0, %s49
      %s66 = sphi 0, %s50
      %s72 = sphi 0, %s74
      %s75 = sphi 0, %s72
      %s76 = sphi 0, %s75
      %s92 = sphi 0, %s76
    $region4: #{tpu_custom_call.1} parent=1 // loop_header_branch
      %18 = sbr.rel (%p16) target = $region8
    $region5: #{tpu_custom_call.1} parent=1 // loop_body
      %s20 = ssub.s32 %s15, 1
      %s21 = ssub.s32 %s15, 2
      %s22 = sadd.s32 %s15, 1
      %s24 = sadd.s32 %s23, 1
      %p27 = scmp.eq.s32.totalorder %s15, 1
      %p28 = scmp.ne.s32.totalorder %s23, %s25
      %p29 = scmp.eq.s32.totalorder %s15, 0
      %p30 = por %p28, %p29
      %p31 = scmp.ne.s32.totalorder %s23, %s25
      %p32 = scmp.eq.s32.totalorder %s20, 1
      %p33 = por %p31, %p32
      %p34 = scmp.ne.s32.totalorder %s25, %s26
      %p35 = scmp.eq.s32.totalorder %s20, 0
      %p36 = por %p34, %p35
      %p37 = scmp.ne.s32.totalorder %s25, %s26
      %p38 = scmp.eq.s32.totalorder %s21, 1
      %p39 = por %p37, %p38
      %p41 = scmp.ne.s32.totalorder %s26, %s40
      %p42 = scmp.eq.s32.totalorder %s21, 0
      %p43 = por %p41, %p42
      %s44 = ssub.s32 %s15, %s22
      %p45 = scmp.eq.s32.totalorder %s44, 0
      %s47 = sadd.s32 %s46, 1
      %s48 = scalar_select %p45, %s46, %s47
      %p51 = pneg %p45
      %p52 = scmp.eq.s32.totalorder %s15, 1
      %p53 = por %p51, %p52
      %p54 = scmp.ne.s32.totalorder %s46, %s49
      %p55 = scmp.eq.s32.totalorder %s15, 0
      %p56 = por %p54, %p55
      %p57 = scmp.ne.s32.totalorder %s46, %s49
      %p58 = scmp.eq.s32.totalorder %s20, 1
      %p59 = por %p57, %p58
      %p60 = scmp.ne.s32.totalorder %s49, %s50
      %p61 = scmp.eq.s32.totalorder %s20, 0
      %p62 = por %p60, %p61
      %p63 = scmp.ne.s32.totalorder %s49, %s50
      %p64 = scmp.eq.s32.totalorder %s21, 1
      %p65 = por %p63, %p64
      %p67 = scmp.ne.s32.totalorder %s50, %s66
      %p68 = scmp.eq.s32.totalorder %s21, 0
      %p69 = por %p67, %p68
      %s70 = ssub.s32 %s15, %s22
      %p71 = scmp.eq.s32.totalorder %s70, 0
      %s73 = sadd.s32 %s72, 1
      %s74 = scalar_select %p71, %s72, %s73
      %p77 = pneg %p71
      %p78 = scmp.eq.s32.totalorder %s15, 1
      %p79 = por %p77, %p78
      %p80 = scmp.ne.s32.totalorder %s72, %s75
      %p81 = scmp.eq.s32.totalorder %s15, 0
      %p82 = por %p80, %p81
      %p83 = scmp.ne.s32.totalorder %s72, %s75
      %p84 = scmp.eq.s32.totalorder %s20, 1
      %p85 = por %p83, %p84
      %p86 = scmp.ne.s32.totalorder %s75, %s76
      %p87 = scmp.eq.s32.totalorder %s20, 0
      %p88 = por %p86, %p87
      %p89 = scmp.ne.s32.totalorder %s75, %s76
      %p90 = scmp.eq.s32.totalorder %s21, 1
      %p91 = por %p89, %p90
      %p93 = scmp.ne.s32.totalorder %s76, %s92
      %p94 = scmp.eq.s32.totalorder %s21, 0
      %p95 = por %p93, %p94
      %p96 = scmp.le.s32.totalorder 1, %s15
      %p97 = scmp.lt.s32.totalorder %s15, 3
      %p98 = pnand %p96, %p97
      %p99 = pneg %p98
      // Predicated region
      $region9: #{tpu_custom_call.1} parent=5 // pred_check
        _
      $region10: #{tpu_custom_call.1} parent=5 // pred_check_branch
        %101 = sbr.rel (%p98) target = $region12
      $region11: #{tpu_custom_call.1} parent=5 // pred_region
        %s102 = ssub.s32 %s15, 1
        // Predicated region
        $region13: #{tpu_custom_call.1} parent=11 // pred_check
          %p103 = pneg %p36
        $region14: #{tpu_custom_call.1} parent=11 // pred_check_branch
          %105 = sbr.rel (%p103) target = $region16
        $region15: #{tpu_custom_call.1} parent=11 // pred_region
          %107 = vsyncadd [#allocation3], 0
          %s109 = sshll.u32 %s0, 4
          %s110 = int_to_ptr.hbm [resolvable:$true] %s109
          %s111 = sshll.u32 [#allocation2], 4
          %s112 = int_to_ptr.vmem [resolvable:$true] %s111
          %114 = dma.hbm_to_vmem [thread:$0]  %s110, 16, %s112, [#allocation3]
        $region16: #{tpu_custom_call.1} parent=11 // pred_fallthru
          _
      $region12: #{tpu_custom_call.1} parent=5 // pred_fallthru
        _
      %p115 = scmp.lt.s32.totalorder %s15, 2
      // Predicated region
      $region17: #{tpu_custom_call.1} parent=5 // pred_check
        %p116 = pneg %p115
      $region18: #{tpu_custom_call.1} parent=5 // pred_check_branch
        %118 = sbr.rel (%p116) target = $region20
      $region19: #{tpu_custom_call.1} parent=5 // pred_region
        // Predicated region
        $region21: #{tpu_custom_call.1} parent=19 // pred_check
          %p119 = pneg %p56
        $region22: #{tpu_custom_call.1} parent=19 // pred_check_branch
          %121 = sbr.rel (%p119) target = $region24
        $region23: #{tpu_custom_call.1} parent=19 // pred_region
          %s122 = sand.u32 %s46, 1
          %s123 = scalar_lea.sflag [#allocation6], %s122
          %s124 = sand.u32 %s46, 1
          %s125 = smul.addr %s124, 32
          %s126 = scalar_lea.vmem [#allocation5], %s125
          %s127 = smul.u32 4, %s15
          %129 = vsyncadd %s123, 0
          %s130 = smul.addr %s127, 8
          %s131 = scalar_lea.hbm %s1, %s130
          %s132 = sshll.u32 %s131, 4
          %s133 = int_to_ptr.hbm [resolvable:$true] %s132
          %s134 = sshll.u32 %s126, 4
          %s135 = int_to_ptr.vmem [resolvable:$true] %s134
          %140 = dma.hbm_to_vmem [thread:$0]  %s133, 512, %s135, %s123, 128, 128, 8
        $region24: #{tpu_custom_call.1} parent=19 // pred_fallthru
          _
      $region20: #{tpu_custom_call.1} parent=5 // pred_fallthru
        _
      %p141 = scmp.le.s32.totalorder 1, %s15
      %p142 = scmp.lt.s32.totalorder %s15, 3
      %p143 = pnand %p141, %p142
      %p144 = pneg %p143
      // Predicated region
      $region25: #{tpu_custom_call.1} parent=5 // pred_check
        _
      $region26: #{tpu_custom_call.1} parent=5 // pred_check_branch
        %146 = sbr.rel (%p143) target = $region28
      $region27: #{tpu_custom_call.1} parent=5 // pred_region
        %s147 = ssub.s32 %s15, 1
        // Predicated region
        $region29: #{tpu_custom_call.1} parent=27 // pred_check
          %p148 = pneg %p36
        $region30: #{tpu_custom_call.1} parent=27 // pred_check_branch
          %150 = sbr.rel (%p148) target = $region32
        $region31: #{tpu_custom_call.1} parent=27 // pred_region
          %152 = dma.done [#allocation3], 16
        $region32: #{tpu_custom_call.1} parent=27 // pred_fallthru
          _
        %s153 = sand.u32 %s49, 1
        %s154 = scalar_lea.sflag [#allocation6], %s153
        %s155 = sand.u32 %s49, 1
        %s156 = smul.addr %s155, 32
        %s157 = scalar_lea.vmem [#allocation5], %s156
        // Predicated region
        $region33: #{tpu_custom_call.1} parent=27 // pred_check
          %p158 = pneg %p62
        $region34: #{tpu_custom_call.1} parent=27 // pred_check_branch
          %160 = sbr.rel (%p158) target = $region36
        $region35: #{tpu_custom_call.1} parent=27 // pred_region
          %162 = dma.done %s154, 512
        $region36: #{tpu_custom_call.1} parent=27 // pred_fallthru
          _
        %p163 = pneg %p36
        %p164 = pneg %p33
        %s165 = sand.u32 %s49, 1
        %s166 = scalar_lea.sflag [#allocation6], %s165
        %s167 = sand.u32 %s49, 1
        %s168 = smul.addr %s167, 32
        %s169 = scalar_lea.vmem [#allocation5], %s168
        %p170 = pneg %p62
        %p171 = pneg %p59
        %p172 = pneg %p88
        %p173 = pneg %p85
        %s174 = sand.u32 %s75, 1
        %s175 = scalar_lea.sflag [#allocation4], %s174
        %s176 = sand.u32 %s75, 1
        %s177 = smul.addr %s176, 32
        %s178 = scalar_lea.vmem [#allocation7], %s177
        %s179 = smul.u32 4, %s20
        %s180 = smul.u32 4, %s20
        %v181 = vld [vmem:[%s157] sm:$0xff]
        %v182 = vld [vmem:[%s157 + $0x8] sm:$0xff]
        %v183 = vld [vmem:[%s157 + $0x10] sm:$0xff]
        %v184 = vld [vmem:[%s157 + $0x18] sm:$0xff]
        %v185 = vld [vmem:[#allocation2] sm:$0x1]
        %vm186 = vcmp.ne.s32.totalorder %v185, 0
        %v187 = vmul.f32 %v181, -0.5
        %v188 = vmul.f32 %v182, -0.5
        %v189 = vmul.f32 %v183, -0.5
        %v190 = vmul.f32 %v184, -0.5
        %v191 = vmul.f32 %v187, 1.442695
        %v192 = vpow.pop %v191
        %v193 = vmul.f32 %v188, 1.442695
        %v194 = vpow.pop %v193
        %v195 = vmul.f32 %v189, 1.442695
        %v196 = vpow.pop %v195
        %v197 = vmul.f32 %v190, 1.442695
        %v198 = vpow.pop %v197
        %v199 = vadd.f32 %v192, 1.0
        %v200 = vadd.f32 %v194, 1.0
        %v201 = vadd.f32 %v196, 1.0
        %v202 = vadd.f32 %v198, 1.0
        %v203 = vrcp.pop %v199
        %v204 = vmul.f32 %v199, %v203
        %v205 = vsub.f32 1.0, %v204
        %v206 = vmul.f32 %v203, %v205
        %v207 = vadd.f32 %v203, %v206
        %vm208 = vweird.f32 %v199
        %vm209 = vweird.f32 %v203
        %vm210 = vmor %vm208, %vm209
        %v211 = vsel %vm210, %v203, %v207
        %v212 = vand.u32 2147483647, %v199
        %vm213 = vcmp.eq.f32.partialorder %v212, 8.507059e+37
        %v214 = vand.u32 %v199, 2147483648
        %v215 = vor.u32 1.1754944e-38, %v214
        %v216 = vsel %vm213, %v215, %v211
        %v217 = vmul.f32 1.0, %v216
        %v218 = vrcp.pop %v200
        %v219 = vmul.f32 %v200, %v218
        %v220 = vsub.f32 1.0, %v219
        %v221 = vmul.f32 %v218, %v220
        %v222 = vadd.f32 %v218, %v221
        %vm223 = vweird.f32 %v200
        %vm224 = vweird.f32 %v218
        %vm225 = vmor %vm223, %vm224
        %v226 = vsel %vm225, %v218, %v222
        %v227 = vand.u32 2147483647, %v200
        %vm228 = vcmp.eq.f32.partialorder %v227, 8.507059e+37
        %v229 = vand.u32 %v200, 2147483648
        %v230 = vor.u32 1.1754944e-38, %v229
        %v231 = vsel %vm228, %v230, %v226
        %v232 = vmul.f32 1.0, %v231
        %v233 = vrcp.pop %v201
        %v234 = vmul.f32 %v201, %v233
        %v235 = vsub.f32 1.0, %v234
        %v236 = vmul.f32 %v233, %v235
        %v237 = vadd.f32 %v233, %v236
        %vm238 = vweird.f32 %v201
        %vm239 = vweird.f32 %v233
        %vm240 = vmor %vm238, %vm239
        %v241 = vsel %vm240, %v233, %v237
        %v242 = vand.u32 2147483647, %v201
        %vm243 = vcmp.eq.f32.partialorder %v242, 8.507059e+37
        %v244 = vand.u32 %v201, 2147483648
        %v245 = vor.u32 1.1754944e-38, %v244
        %v246 = vsel %vm243, %v245, %v241
        %v247 = vmul.f32 1.0, %v246
        %v248 = vrcp.pop %v202
        %v249 = vmul.f32 %v202, %v248
        %v250 = vsub.f32 1.0, %v249
        %v251 = vmul.f32 %v248, %v250
        %v252 = vadd.f32 %v248, %v251
        %vm253 = vweird.f32 %v202
        %vm254 = vweird.f32 %v248
        %vm255 = vmor %vm253, %vm254
        %v256 = vsel %vm255, %v248, %v252
        %v257 = vand.u32 2147483647, %v202
        %vm258 = vcmp.eq.f32.partialorder %v257, 8.507059e+37
        %v259 = vand.u32 %v202, 2147483648
        %v260 = vor.u32 1.1754944e-38, %v259
        %v261 = vsel %vm258, %v260, %v256
        %v262 = vmul.f32 1.0, %v261
        %v263 = vsel %vm186, 1, 0
        %v264 = vperm.slane %v263, 0
        %vm265 = vcmp.eq.s32.totalorder %v264, 1
        %v266 = vsel %vm265, %v217, %v181
        %v267 = vsel %vm265, %v232, %v182
        %v268 = vsel %vm265, %v247, %v183
        %v269 = vsel %vm265, %v262, %v184
        %270 = vst [vmem:[%s178] sm:$0xff] %v266
        %271 = vst [vmem:[%s178 + $0x8] sm:$0xff] %v267
        %272 = vst [vmem:[%s178 + $0x10] sm:$0xff] %v268
        %273 = vst [vmem:[%s178 + $0x18] sm:$0xff] %v269
        %s274 = sand.u32 %s75, 1
        %s275 = scalar_lea.sflag [#allocation4], %s274
        %s276 = sand.u32 %s75, 1
        %s277 = smul.addr %s276, 32
        %s278 = scalar_lea.vmem [#allocation7], %s277
        // Predicated region
        $region37: #{tpu_custom_call.1} parent=27 // pred_check
          %p279 = pneg %p85
        $region38: #{tpu_custom_call.1} parent=27 // pred_check_branch
          %281 = sbr.rel (%p279) target = $region40
        $region39: #{tpu_custom_call.1} parent=27 // pred_region
          %s282 = smul.u32 4, %s20
          %284 = vsyncadd %s275, 0
          %s285 = smul.addr %s282, 8
          %s286 = scalar_lea.hbm %s2, %s285
          %s287 = sshll.u32 %s278, 4
          %s288 = int_to_ptr.vmem [resolvable:$true] %s287
          %s289 = sshll.u32 %s286, 4
          %s290 = int_to_ptr.hbm [resolvable:$true] %s289
          %295 = dma.vmem_to_hbm [thread:$0]  %s288, 512, %s290, %s275, 128, 128, 8
        $region40: #{tpu_custom_call.1} parent=27 // pred_fallthru
          _
      $region28: #{tpu_custom_call.1} parent=5 // pred_fallthru
        _
      %p296 = scmp.le.s32.totalorder 2, %s15
      // Predicated region
      $region41: #{tpu_custom_call.1} parent=5 // pred_check
        %p297 = pneg %p296
      $region42: #{tpu_custom_call.1} parent=5 // pred_check_branch
        %299 = sbr.rel (%p297) target = $region44
      $region43: #{tpu_custom_call.1} parent=5 // pred_region
        %s300 = ssub.s32 %s15, 2
        // Predicated region
        $region45: #{tpu_custom_call.1} parent=43 // pred_check
          %p301 = pneg %p91
        $region46: #{tpu_custom_call.1} parent=43 // pred_check_branch
          %303 = sbr.rel (%p301) target = $region48
        $region47: #{tpu_custom_call.1} parent=43 // pred_region
          %s304 = sand.u32 %s76, 1
          %s305 = scalar_lea.sflag [#allocation4], %s304
          %s306 = sand.u32 %s76, 1
          %s307 = smul.addr %s306, 32
          %s308 = scalar_lea.vmem [#allocation7], %s307
          %310 = dma.done %s305, 512
        $region48: #{tpu_custom_call.1} parent=43 // pred_fallthru
          _
      $region44: #{tpu_custom_call.1} parent=5 // pred_fallthru
        _
    $region6: #{tpu_custom_call.1} parent=1 // loop_footer
      %s19 = sadd.s32 1, %s15
    $region7: #{tpu_custom_call.1} parent=1 // loop_footer_branch
      %14 = sbr.rel target = $region3
    $region8: #{tpu_custom_call.1} parent=1 // loop_exit
      _
    %311 = vsyncpa [#allocation3], 1
    %s312 = scalar_lea.sflag [#allocation3], 1
    %313 = vsyncpa %s312, 1
    %314 = vsyncpa [#allocation6], 1
    %s315 = scalar_lea.sflag [#allocation6], 1
    %316 = vsyncpa %s315, 1
    %317 = vsyncpa [#allocation4], 1
    %s318 = scalar_lea.sflag [#allocation4], 1
    %319 = vsyncpa %s318, 1

</llo_original>
